<compile_context>
chip_gen: v6e
topology: v6e:2x2x1
jax: 0.10.0
libtpu: 0.0.40
codegen_flags: <defaults>
</compile_context>

<pallas_src>
import jax
import jax.numpy as jnp
from jax.experimental import pallas as pl
from jax.experimental.pallas import tpu as pltpu


def decoder_kernel(ids_ref, hid_ref, enc_ref,
                   w1_ref, w2_ref, emb_ref, wih_ctx_ref, wih_emb_ref, fc_ref,
                   bias_ref, out_ref):
    B, S, U = enc_ref.shape
    D = hid_ref.shape[1]
    Vsz = fc_ref.shape[1]           # == emb_ref.shape[0] (vocab size)
    f32 = jnp.float32
    mdt = enc_ref.dtype             # matmul operand dtype (f32, or bf16 on v6e/v7x)

    # ---- packed small params: one (8, L) f32 tile, static 2-D slices --------
    b12   = bias_ref[0:1, :D]          # W1.bias + W2.bias
    v_w   = bias_ref[1:2, :D]          # V.weight (V.bias dropped: softmax shift-invariant)
    b_rzn = bias_ref[2:3, :3 * D]      # bias_ih + [bias_hh_r, bias_hh_z, 0]  (h0 == 0)
    bhh_n = bias_ref[3:4, :D]          # bias_hh_n (multiplied by r inside the n gate)
    fc_b  = bias_ref[4:5, :Vsz]        # fc.bias

    enc = enc_ref[...]                                           # (B, S, U)

    # ---- Bahdanau attention --------------------------------------------------
    # W1(enc) as a single 2-D MXU matmul. With S a multiple of 8 the reshapes
    # only regroup whole sublane blocks (no relayout copy).
    w1_out = jnp.dot(enc.reshape(B * S, U), w1_ref[...],
                     preferred_element_type=f32).reshape(B, S, D)
    w2_out = jnp.dot(hid_ref[...], w2_ref[...],
                     preferred_element_type=f32) + b12            # (B, D) f32
    score = jnp.tanh(w1_out + w2_out[:, None, :])                 # (B, S, D) f32
    v_score = jnp.sum(score * v_w, axis=-1)                       # (B, S)
    v_score = v_score - jnp.max(v_score, axis=-1, keepdims=True)
    e = jnp.exp(v_score)
    attn = e * pl.reciprocal(jnp.sum(e, axis=-1, keepdims=True), approx=True)  # (B, S)
    context = jnp.sum(attn[:, :, None] * enc.astype(f32), axis=1)  # (B, U) f32

    # ---- embedding lookup: one-hot @ flattened table (vectorized, no concat) --
    onehot = (jax.lax.broadcasted_iota(jnp.int32, (B, Vsz), 1)
              == ids_ref[...]).astype(mdt)                         # (B, vocab)
    emb_x = jnp.dot(onehot, emb_ref[...], preferred_element_type=f32)  # (B, E) f32
    # TODO(synk): for production vocab sizes, switch to a scalar-prefetch DMA row
    # gather instead of keeping the full embedding table resident in VMEM.

    # ---- single-step GRU (h0 == 0: weight_hh matmul and z*h_prev vanish) ------
    gi = (jnp.dot(context.astype(mdt), wih_ctx_ref[...], preferred_element_type=f32)
          + jnp.dot(emb_x.astype(mdt), wih_emb_ref[...], preferred_element_type=f32)
          + b_rzn)                                                 # (B, 3D) f32
    r = jax.nn.sigmoid(gi[:, :D])
    z = jax.nn.sigmoid(gi[:, D:2 * D])
    n = jnp.tanh(gi[:, 2 * D:] + r * bhh_n)
    h_new = (1.0 - z) * n                                          # (B, D) f32

    # ---- final projection + single fused, lane-dense output store ------------
    logits = jnp.dot(h_new.astype(mdt), fc_ref[...],
                     preferred_element_type=f32) + fc_b            # (B, vocab) f32
    pad = out_ref.shape[1] - (Vsz + D + S)
    pieces = [logits, h_new, attn]
    if pad:
        pieces.append(jnp.zeros((B, pad), f32))
    out_ref[...] = jnp.concatenate(pieces, axis=-1)                # one store, one DMA


def prepare_decoder_params(p, matmul_dtype=jnp.float32):
    """One-time conversion from PyTorch-layout params to kernel layout.

    Drops dead params (gru weight_hh, V.bias), fuses/folds biases, flattens the
    embedding table, splits weight_ih into context/embedding halves, and packs
    every small vector into a single (8, L) f32 tile.
    matmul_dtype=bf16 is the recommended MXU-operand dtype on v6e/v7x.
    """
    D = p['w1_w'].shape[0]           # dec_units (== enc_units for this module)
    U = p['w1_w'].shape[1]           # enc_units
    Vsz = p['fc_w'].shape[0]         # vocab size

    L = ((max(3 * D, Vsz, 128) + 127) // 128) * 128
    bias = jnp.zeros((8, L), jnp.float32)
    bias = bias.at[0, :D].set(p['w1_b'] + p['w2_b'])               # fused W1/W2 bias
    bias = bias.at[1, :D].set(p['v_w'][0])                         # V weight row
    b_rzn = p['gru_bih'] + jnp.concatenate(
        [p['gru_bhh'][:2 * D], jnp.zeros((D,), jnp.float32)])      # fold bhh_r, bhh_z
    bias = bias.at[2, :3 * D].set(b_rzn)
    bias = bias.at[3, :D].set(p['gru_bhh'][2 * D:])                # bhh_n
    bias = bias.at[4, :Vsz].set(p['fc_b'])
    # NOTE: V.bias is intentionally dropped (softmax over S is shift-invariant);
    #       gru weight_hh is intentionally dropped (h0 == 0 in this forward).

    return dict(
        w1_t=p['w1_w'].T.astype(matmul_dtype),                     # (U, D)
        w2_t=p['w2_w'].T.astype(matmul_dtype),                     # (D, D)
        emb=p['emb'].astype(matmul_dtype),                         # (vocab, E) flattened
        wih_ctx_t=p['gru_wih'][:, :U].T.astype(matmul_dtype),      # (U, 3D)
        wih_emb_t=p['gru_wih'][:, U:].T.astype(matmul_dtype),      # (E, 3D)
        fc_t=p['fc_w'].T.astype(matmul_dtype),                     # (D, vocab)
        bias=bias,                                                 # packed f32 tile
    )


def decoder_forward(x, hidden, enc_output, kp):
    """Layout glue (the PyTorch permutes) + one gridless pallas_call.

    Returns (logits (B,vocab), state (1,B,D), attention_weights (B,S,1)),
    matching the PyTorch Decoder.forward outputs.
    """
    B = x.shape[0]
    mdt = kp['fc_t'].dtype
    ids = x.reshape(B, 1).astype(jnp.int32)
    hid = hidden[0].astype(mdt)                                    # (B, D)
    enc = jnp.transpose(enc_output, (1, 0, 2)).astype(mdt)         # (B, S, U)
    S, D = enc.shape[1], hid.shape[1]
    Vsz = kp['fc_t'].shape[1]
    outw = ((Vsz + D + S + 127) // 128) * 128                      # lane-dense fused slab

    vmem = pl.BlockSpec(memory_space=pltpu.MemorySpace.VMEM)
    # Gridless on purpose: the whole problem fits VMEM and each grid step would
    # only add fixed overhead at these shapes.
    # TODO(synk): at production S/vocab, tile enc over S (online softmax) and fc
    # over vocab with a grid, sized for v7x's 64 MiB VMEM.
    fused = pl.pallas_call(
        decoder_kernel,
        out_shape=jax.ShapeDtypeStruct((B, outw), jnp.float32),
        in_specs=[vmem] * 10,
        out_specs=vmem,
    )(ids, hid, enc,
      kp['w1_t'], kp['w2_t'], kp['emb'], kp['wih_ctx_t'], kp['wih_emb_t'],
      kp['fc_t'], kp['bias'])

    logits = fused[:, :Vsz]
    state = fused[:, Vsz:Vsz + D]
    attn = fused[:, Vsz + D:Vsz + D + S]
    return logits, state[None], attn[:, :, None]


def decoder_reference(x, hidden, enc_output, p):
    """Pure-JAX f32 reference mirroring the PyTorch forward exactly."""
    D = hidden.shape[-1]
    enc = jnp.transpose(enc_output, (1, 0, 2))                     # (B, S, U)
    hid = jnp.transpose(hidden, (1, 0, 2))                         # (B, 1, D)
    score = jnp.tanh(enc @ p['w1_w'].T + p['w1_b'] + hid @ p['w2_w'].T + p['w2_b'])
    v = score @ p['v_w'].T + p['v_b']                              # (B, S, 1)
    attn = jax.nn.softmax(v, axis=1)
    context = jnp.sum(attn * enc, axis=1)                          # (B, U)
    emb_x = p['emb'][x[:, 0]]                                      # (B, E)
    gru_in = jnp.concatenate([context, emb_x], axis=-1)            # (B, U+E)
    gi = gru_in @ p['gru_wih'].T + p['gru_bih']
    gh = p['gru_bhh']                                              # h0 = 0
    r = jax.nn.sigmoid(gi[:, :D] + gh[:D])
    z = jax.nn.sigmoid(gi[:, D:2 * D] + gh[D:2 * D])
    n = jnp.tanh(gi[:, 2 * D:] + r * gh[2 * D:])
    h = (1.0 - z) * n
    logits = h @ p['fc_w'].T + p['fc_b']
    return logits, h[None], attn


if __name__ == "__main__":
    # Small shapes consistent with the module (enc_units == dec_units required).
    B, S = 2, 8
    vocab, E, U, D = 64, 32, 32, 32

    key = jax.random.PRNGKey(0)
    ks = jax.random.split(key, 16)

    def init(k, shape):
        return (0.1 * jax.random.normal(k, shape)).astype(jnp.float32)

    # PyTorch-layout parameters ((out, in) weights, 1-D biases).
    params = {
        'emb':     init(ks[0], (vocab, E)),               # Embedding(vocab, E)
        'gru_wih': init(ks[1], (3 * D, U + E)),           # GRU weight_ih_l0 ([ctx|emb] cols)
        'gru_whh': init(ks[2], (3 * D, D)),               # GRU weight_hh_l0 (dead: h0 == 0)
        'gru_bih': init(ks[3], (3 * D,)),
        'gru_bhh': init(ks[4], (3 * D,)),
        'fc_w':    init(ks[5], (vocab, D)), 'fc_b': init(ks[6], (vocab,)),
        'w1_w':    init(ks[7], (D, U)),     'w1_b': init(ks[8], (D,)),
        'w2_w':    init(ks[9], (D, U)),     'w2_b': init(ks[10], (D,)),
        'v_w':     init(ks[11], (1, U)),    'v_b':  init(ks[12], (1,)),
    }

    x = jax.random.randint(ks[13], (B, 1), 0, vocab, dtype=jnp.int32)
    hidden = init(ks[14], (1, B, D))
    enc_output = init(ks[15], (S, B, U))

    ref_logits, ref_state, ref_attn = decoder_reference(x, hidden, enc_output, params)

    # --- f32 path: exact parity with the PyTorch module ----------------------
    kp32 = prepare_decoder_params(params, jnp.float32)
    logits, state, attn = decoder_forward(x, hidden, enc_output, kp32)
    jax.block_until_ready((logits, state, attn))
    assert logits.shape == (B, vocab) and state.shape == (1, B, D) and attn.shape == (B, S, 1)
    assert jnp.allclose(logits, ref_logits, atol=2e-3, rtol=2e-3)
    assert jnp.allclose(state, ref_state, atol=2e-3, rtol=2e-3)
    assert jnp.allclose(attn, ref_attn, atol=2e-3, rtol=2e-3)

    # --- bf16 MXU-operand path (v6e/v7x recommendation; f32 accumulate/VPU) ---
    kpbf = prepare_decoder_params(params, jnp.bfloat16)
    logits_b, state_b, attn_b = decoder_forward(x, hidden, enc_output, kpbf)
    jax.block_until_ready((logits_b, state_b, attn_b))
    assert jnp.allclose(logits_b, ref_logits, atol=2e-2, rtol=2e-2)
    assert jnp.allclose(state_b, ref_state, atol=2e-2, rtol=2e-2)
    assert jnp.allclose(attn_b, ref_attn, atol=2e-2, rtol=2e-2)

    print("KERNEL_OK")
</pallas_src>

<mosaic_0001>
module attributes {stable_mosaic.version = 11 : i64} {
  func.func @decoder_kernel(%arg0: memref<2x1xi32, #tpu.memory_space<vmem>>, %arg1: memref<2x32xf32, #tpu.memory_space<vmem>>, %arg2: memref<2x8x32xf32, #tpu.memory_space<vmem>>, %arg3: memref<32x32xf32, #tpu.memory_space<vmem>>, %arg4: memref<32x32xf32, #tpu.memory_space<vmem>>, %arg5: memref<64x32xf32, #tpu.memory_space<vmem>>, %arg6: memref<32x96xf32, #tpu.memory_space<vmem>>, %arg7: memref<32x96xf32, #tpu.memory_space<vmem>>, %arg8: memref<32x64xf32, #tpu.memory_space<vmem>>, %arg9: memref<8x128xf32, #tpu.memory_space<vmem>>, %arg10: memref<2x128xf32, #tpu.memory_space<vmem>>) attributes {dimension_semantics = [], scalar_prefetch = 0 : i64, scratch_operands = 0 : i64, tpu.core_type = #tpu.core_type<tc>} {
    %c0 = arith.constant 0 : index
    %c0_0 = arith.constant 0 : index
    %0 = vector.load %arg9[%c0, %c0_0] : memref<8x128xf32, #tpu.memory_space<vmem>>, vector<1x32xf32>
    %c1 = arith.constant 1 : index
    %c0_1 = arith.constant 0 : index
    %1 = vector.load %arg9[%c1, %c0_1] : memref<8x128xf32, #tpu.memory_space<vmem>>, vector<1x32xf32>
    %c2 = arith.constant 2 : index
    %c0_2 = arith.constant 0 : index
    %2 = vector.load %arg9[%c2, %c0_2] : memref<8x128xf32, #tpu.memory_space<vmem>>, vector<1x96xf32>
    %c3 = arith.constant 3 : index
    %c0_3 = arith.constant 0 : index
    %3 = vector.load %arg9[%c3, %c0_3] : memref<8x128xf32, #tpu.memory_space<vmem>>, vector<1x32xf32>
    %c4 = arith.constant 4 : index
    %c0_4 = arith.constant 0 : index
    %4 = vector.load %arg9[%c4, %c0_4] : memref<8x128xf32, #tpu.memory_space<vmem>>, vector<1x64xf32>
    %c0_5 = arith.constant 0 : index
    %c0_6 = arith.constant 0 : index
    %c0_7 = arith.constant 0 : index
    %5 = vector.load %arg2[%c0_5, %c0_6, %c0_7] : memref<2x8x32xf32, #tpu.memory_space<vmem>>, vector<2x8x32xf32>
    %6 = vector.shape_cast %5 : vector<2x8x32xf32> to vector<16x32xf32>
    %c0_8 = arith.constant 0 : index
    %c0_9 = arith.constant 0 : index
    %7 = vector.load %arg3[%c0_8, %c0_9] : memref<32x32xf32, #tpu.memory_space<vmem>>, vector<32x32xf32>
    %cst = arith.constant dense<0.000000e+00> : vector<16x32xf32>
    %8 = tpu.matmul %6, %7, %cst {dimension_numbers = #tpu.dot_dimension_numbers<[1], [0], [0], [1], [0, 0, 1, 1], [], []>} : vector<16x32xf32>, vector<32x32xf32>, vector<16x32xf32> -> vector<16x32xf32>
    %9 = vector.shape_cast %8 : vector<16x32xf32> to vector<2x8x32xf32>
    %c0_10 = arith.constant 0 : index
    %c0_11 = arith.constant 0 : index
    %10 = vector.load %arg1[%c0_10, %c0_11] : memref<2x32xf32, #tpu.memory_space<vmem>>, vector<2x32xf32>
    %c0_12 = arith.constant 0 : index
    %c0_13 = arith.constant 0 : index
    %11 = vector.load %arg4[%c0_12, %c0_13] : memref<32x32xf32, #tpu.memory_space<vmem>>, vector<32x32xf32>
    %cst_14 = arith.constant dense<0.000000e+00> : vector<2x32xf32>
    %12 = tpu.matmul %10, %11, %cst_14 {dimension_numbers = #tpu.dot_dimension_numbers<[1], [0], [0], [1], [0, 0, 1, 1], [], []>} : vector<2x32xf32>, vector<32x32xf32>, vector<2x32xf32> -> vector<2x32xf32>
    %13 = vector.broadcast %0 : vector<1x32xf32> to vector<2x32xf32>
    %14 = arith.addf %12, %13 : vector<2x32xf32>
    %15 = vector.shape_cast %14 : vector<2x32xf32> to vector<2x1x32xf32>
    %16 = vector.broadcast %15 : vector<2x1x32xf32> to vector<2x8x32xf32>
    %17 = arith.addf %9, %16 : vector<2x8x32xf32>
    %18 = math.tanh %17 : vector<2x8x32xf32>
    %19 = vector.shape_cast %1 : vector<1x32xf32> to vector<1x1x32xf32>
    %20 = vector.broadcast %19 : vector<1x1x32xf32> to vector<2x8x32xf32>
    %21 = arith.mulf %18, %20 : vector<2x8x32xf32>
    %cst_15 = arith.constant dense<0.000000e+00> : vector<2x8xf32>
    %22 = vector.multi_reduction <add>, %21, %cst_15 [2] : vector<2x8x32xf32> to vector<2x8xf32>
    %cst_16 = arith.constant dense<0xFF800000> : vector<2xf32>
    %23 = vector.multi_reduction <maximumf>, %22, %cst_16 [1] : vector<2x8xf32> to vector<2xf32>
    %24 = vector.shape_cast %23 : vector<2xf32> to vector<2x1xf32>
    %25 = vector.broadcast %24 : vector<2x1xf32> to vector<2x8xf32>
    %26 = arith.subf %22, %25 : vector<2x8xf32>
    %27 = math.exp %26 : vector<2x8xf32>
    %cst_17 = arith.constant dense<0.000000e+00> : vector<2xf32>
    %28 = vector.multi_reduction <add>, %27, %cst_17 [1] : vector<2x8xf32> to vector<2xf32>
    %29 = vector.shape_cast %28 : vector<2xf32> to vector<2x1xf32>
    %30 = tpu.reciprocal %29 {approx = true} : vector<2x1xf32> -> vector<2x1xf32>
    %31 = vector.broadcast %30 : vector<2x1xf32> to vector<2x8xf32>
    %32 = arith.mulf %27, %31 : vector<2x8xf32>
    %33 = vector.shape_cast %32 : vector<2x8xf32> to vector<2x8x1xf32>
    %34 = vector.broadcast %33 : vector<2x8x1xf32> to vector<2x8x32xf32>
    %35 = arith.mulf %34, %5 : vector<2x8x32xf32>
    %cst_18 = arith.constant dense<0.000000e+00> : vector<2x32xf32>
    %36 = vector.multi_reduction <add>, %35, %cst_18 [1] : vector<2x8x32xf32> to vector<2x32xf32>
    %37 = tpu.iota {dimensions = array<i32: 1>} : vector<2x64xi32>
    %c0_19 = arith.constant 0 : index
    %c0_20 = arith.constant 0 : index
    %38 = vector.load %arg0[%c0_19, %c0_20] : memref<2x1xi32, #tpu.memory_space<vmem>>, vector<2x1xi32>
    %39 = vector.broadcast %38 : vector<2x1xi32> to vector<2x64xi32>
    %40 = arith.cmpi eq, %37, %39 : vector<2x64xi32>
    %41 = arith.extui %40 : vector<2x64xi1> to vector<2x64xi32>
    %42 = arith.sitofp %41 : vector<2x64xi32> to vector<2x64xf32>
    %c0_21 = arith.constant 0 : index
    %c0_22 = arith.constant 0 : index
    %43 = vector.load %arg5[%c0_21, %c0_22] : memref<64x32xf32, #tpu.memory_space<vmem>>, vector<64x32xf32>
    %cst_23 = arith.constant dense<0.000000e+00> : vector<2x32xf32>
    %44 = tpu.matmul %42, %43, %cst_23 {dimension_numbers = #tpu.dot_dimension_numbers<[1], [0], [0], [1], [0, 0, 1, 1], [], []>} : vector<2x64xf32>, vector<64x32xf32>, vector<2x32xf32> -> vector<2x32xf32>
    %c0_24 = arith.constant 0 : index
    %c0_25 = arith.constant 0 : index
    %45 = vector.load %arg6[%c0_24, %c0_25] : memref<32x96xf32, #tpu.memory_space<vmem>>, vector<32x96xf32>
    %cst_26 = arith.constant dense<0.000000e+00> : vector<2x96xf32>
    %46 = tpu.matmul %36, %45, %cst_26 {dimension_numbers = #tpu.dot_dimension_numbers<[1], [0], [0], [1], [0, 0, 1, 1], [], []>} : vector<2x32xf32>, vector<32x96xf32>, vector<2x96xf32> -> vector<2x96xf32>
    %c0_27 = arith.constant 0 : index
    %c0_28 = arith.constant 0 : index
    %47 = vector.load %arg7[%c0_27, %c0_28] : memref<32x96xf32, #tpu.memory_space<vmem>>, vector<32x96xf32>
    %cst_29 = arith.constant dense<0.000000e+00> : vector<2x96xf32>
    %48 = tpu.matmul %44, %47, %cst_29 {dimension_numbers = #tpu.dot_dimension_numbers<[1], [0], [0], [1], [0, 0, 1, 1], [], []>} : vector<2x32xf32>, vector<32x96xf32>, vector<2x96xf32> -> vector<2x96xf32>
    %49 = arith.addf %46, %48 : vector<2x96xf32>
    %50 = vector.broadcast %2 : vector<1x96xf32> to vector<2x96xf32>
    %51 = arith.addf %49, %50 : vector<2x96xf32>
    %52 = vector.extract_strided_slice %51 {offsets = [0, 0], sizes = [2, 32], strides = [1, 1]} : vector<2x96xf32> to vector<2x32xf32>
    %53 = arith.negf %52 : vector<2x32xf32>
    %54 = math.exp %53 : vector<2x32xf32>
    %cst_30 = arith.constant 1.000000e+00 : f32
    %55 = vector.broadcast %cst_30 : f32 to vector<2x32xf32>
    %56 = arith.addf %55, %54 : vector<2x32xf32>
    %57 = arith.divf %55, %56 : vector<2x32xf32>
    %58 = vector.extract_strided_slice %51 {offsets = [0, 32], sizes = [2, 32], strides = [1, 1]} : vector<2x96xf32> to vector<2x32xf32>
    %59 = arith.negf %58 : vector<2x32xf32>
    %60 = math.exp %59 : vector<2x32xf32>
    %cst_31 = arith.constant 1.000000e+00 : f32
    %61 = vector.broadcast %cst_31 : f32 to vector<2x32xf32>
    %62 = arith.addf %61, %60 : vector<2x32xf32>
    %63 = arith.divf %61, %62 : vector<2x32xf32>
    %64 = vector.extract_strided_slice %51 {offsets = [0, 64], sizes = [2, 32], strides = [1, 1]} : vector<2x96xf32> to vector<2x32xf32>
    %65 = vector.broadcast %3 : vector<1x32xf32> to vector<2x32xf32>
    %66 = arith.mulf %57, %65 : vector<2x32xf32>
    %67 = arith.addf %64, %66 : vector<2x32xf32>
    %68 = math.tanh %67 : vector<2x32xf32>
    %cst_32 = arith.constant 1.000000e+00 : f32
    %69 = vector.broadcast %cst_32 : f32 to vector<2x32xf32>
    %70 = arith.subf %69, %63 : vector<2x32xf32>
    %71 = arith.mulf %70, %68 : vector<2x32xf32>
    %c0_33 = arith.constant 0 : index
    %c0_34 = arith.constant 0 : index
    %72 = vector.load %arg8[%c0_33, %c0_34] : memref<32x64xf32, #tpu.memory_space<vmem>>, vector<32x64xf32>
    %cst_35 = arith.constant dense<0.000000e+00> : vector<2x64xf32>
    %73 = tpu.matmul %71, %72, %cst_35 {dimension_numbers = #tpu.dot_dimension_numbers<[1], [0], [0], [1], [0, 0, 1, 1], [], []>} : vector<2x32xf32>, vector<32x64xf32>, vector<2x64xf32> -> vector<2x64xf32>
    %74 = vector.broadcast %4 : vector<1x64xf32> to vector<2x64xf32>
    %75 = arith.addf %73, %74 : vector<2x64xf32>
    %cst_36 = arith.constant 0.000000e+00 : f32
    %76 = vector.broadcast %cst_36 : f32 to vector<2x24xf32>
    %77 = tpu.concatenate %75, %71, %32, %76 in 1 : vector<2x64xf32>, vector<2x32xf32>, vector<2x8xf32>, vector<2x24xf32> -> vector<2x128xf32>
    %c0_37 = arith.constant 0 : index
    %c0_38 = arith.constant 0 : index
    %78 = vector.load %arg10[%c0_37, %c0_38] : memref<2x128xf32, #tpu.memory_space<vmem>>, vector<2x128xf32>
    tpu.vector_store %arg10[%c0_37, %c0_38], %77 {strides = array<i32>} : memref<2x128xf32, #tpu.memory_space<vmem>>, vector<2x128xf32>,
    return
  }
}

</mosaic_0001>

<llo_original>
// kernel: tpu_custom_call.1
$region0: #{tpu_custom_call.1}
  #allocation0 [shape = 'u32[]', space=smem, size = 0x4, offset = 0x4, fixed_abs, tag = 'smem constant byte address 0x4 - core index']
  #allocation1 [shape = 'u32[144,128]{1,0:T(1,128)}', space=vmem, size = 0x12000, scoped, tag = 'internal scratch']
  %s0 = inlined_call_operand.vmem [shape: s32[2,1], index: 0, kind: input, shape index: {}]
  %s1 = inlined_call_operand.hbm [shape: f32[2,32], index: 1, kind: input, shape index: {}]
  %s2 = inlined_call_operand.hbm [shape: f32[2,8,32], index: 2, kind: input, shape index: {}]
  %s3 = inlined_call_operand.vmem [shape: f32[32,32], index: 3, kind: input, shape index: {}]
  %s4 = inlined_call_operand.vmem [shape: f32[32,32], index: 4, kind: input, shape index: {}]
  %s5 = inlined_call_operand.vmem [shape: f32[64,32], index: 5, kind: input, shape index: {}]
  %s6 = inlined_call_operand.vmem [shape: f32[32,96], index: 6, kind: input, shape index: {}]
  %s7 = inlined_call_operand.hbm [shape: f32[32,96], index: 7, kind: input, shape index: {}]
  %s8 = inlined_call_operand.hbm [shape: f32[32,64], index: 8, kind: input, shape index: {}]
  %s9 = inlined_call_operand.vmem [shape: f32[8,128], index: 9, kind: input, shape index: {}]
  %s10 = inlined_call_operand.hbm [shape: f32[2,128], index: 10, kind: output, shape index: {}]
  %s11 = sld [smem:[#allocation0]]
  $region66: #{tpu_custom_call.1} parent=0
    _
  %s13 = ssub.s32 1, %s11
  %s14 = scalar_select 0, %s13, %s11
  $region1: #{tpu_custom_call.1} parent=0
    #allocation2 [shape = 'u8[1024]{0}', space=vmem, size = 0x400, scoped, tag = 'input window, operand 1, single buffered']
    #allocation3 [shape = 's32[1]{0}', space=sflag, size = 0x4, scoped, tag = 'scoped memory for tpu_custom_call.1']
    #allocation4 [shape = 's32[1]{0}', space=sflag, size = 0x4, scoped, tag = 'scoped memory for tpu_custom_call.1']
    #allocation5 [shape = 'u8[8192]{0}', space=vmem, size = 0x2000, scoped, tag = 'input window, operand 2, single buffered']
    #allocation6 [shape = 's32[1]{0}', space=sflag, size = 0x4, scoped, tag = 'scoped memory for tpu_custom_call.1']
    #allocation7 [shape = 'u8[16384]{0}', space=vmem, size = 0x4000, scoped, tag = 'input window, operand 7, single buffered']
    #allocation8 [shape = 'u8[16384]{0}', space=vmem, size = 0x4000, scoped, tag = 'input window, operand 8, single buffered']
    #allocation9 [shape = 's32[1]{0}', space=sflag, size = 0x4, scoped, tag = 'scoped memory for tpu_custom_call.1']
    #allocation10 [shape = 'u8[1024]{0}', space=vmem, size = 0x400, scoped, tag = 'output window, operand 0, single buffered']
    %15 = vsyncpa [#allocation3], 0
    %16 = vsyncpa [#allocation6], 0
    %17 = vsyncpa [#allocation9], 0
    %18 = vsyncpa [#allocation4], 0
    // Predicated region
    $region2: #{tpu_custom_call.1} parent=1 // pred_check
      _
    $region3: #{tpu_custom_call.1} parent=1 // pred_check_branch
      %20 = sbr.rel (0) target = $region5
    $region4: #{tpu_custom_call.1} parent=1 // pred_region
      _
    $region5: #{tpu_custom_call.1} parent=1 // pred_fallthru
      _
    // Predicated region
    $region6: #{tpu_custom_call.1} parent=1 // pred_check
      _
    $region7: #{tpu_custom_call.1} parent=1 // pred_check_branch
      %22 = sbr.rel (0) target = $region9
    $region8: #{tpu_custom_call.1} parent=1 // pred_region
      %s24 = ssub.s32 32, 32
      %25 = vsyncadd [#allocation3], %s24
      %s27 = sshll.u32 [#allocation2], 4
      %s28 = int_to_ptr.vmem [resolvable:$true] %s27
      %30 = dma.hbm_to_vmem [thread:$0]  %s1, 32, %s28, [#allocation3]
    $region9: #{tpu_custom_call.1} parent=1 // pred_fallthru
      _
    // Predicated region
    $region10: #{tpu_custom_call.1} parent=1 // pred_check
      _
    $region11: #{tpu_custom_call.1} parent=1 // pred_check_branch
      %32 = sbr.rel (0) target = $region13
    $region12: #{tpu_custom_call.1} parent=1 // pred_region
      %s34 = ssub.s32 256, 256
      %35 = vsyncadd [#allocation6], %s34
      %s36 = sshll.u32 [#allocation5], 4
      %s37 = int_to_ptr.vmem [resolvable:$true] %s36
      %42 = dma.hbm_to_vmem [thread:$0]  %s2, 256, %s37, [#allocation6], 128, 128, 8
    $region13: #{tpu_custom_call.1} parent=1 // pred_fallthru
      _
    // Predicated region
    $region14: #{tpu_custom_call.1} parent=1 // pred_check
      _
    $region15: #{tpu_custom_call.1} parent=1 // pred_check_branch
      %44 = sbr.rel (0) target = $region17
    $region16: #{tpu_custom_call.1} parent=1 // pred_region
      _
    $region17: #{tpu_custom_call.1} parent=1 // pred_fallthru
      _
    // Predicated region
    $region18: #{tpu_custom_call.1} parent=1 // pred_check
      _
    $region19: #{tpu_custom_call.1} parent=1 // pred_check_branch
      %46 = sbr.rel (0) target = $region21
    $region20: #{tpu_custom_call.1} parent=1 // pred_region
      _
    $region21: #{tpu_custom_call.1} parent=1 // pred_fallthru
      _
    // Predicated region
    $region22: #{tpu_custom_call.1} parent=1 // pred_check
      _
    $region23: #{tpu_custom_call.1} parent=1 // pred_check_branch
      %48 = sbr.rel (0) target = $region25
    $region24: #{tpu_custom_call.1} parent=1 // pred_region
      _
    $region25: #{tpu_custom_call.1} parent=1 // pred_fallthru
      _
    // Predicated region
    $region26: #{tpu_custom_call.1} parent=1 // pred_check
      _
    $region27: #{tpu_custom_call.1} parent=1 // pred_check_branch
      %50 = sbr.rel (0) target = $region29
    $region28: #{tpu_custom_call.1} parent=1 // pred_region
      _
    $region29: #{tpu_custom_call.1} parent=1 // pred_fallthru
      _
    // Predicated region
    $region30: #{tpu_custom_call.1} parent=1 // pred_check
      _
    $region31: #{tpu_custom_call.1} parent=1 // pred_check_branch
      %52 = sbr.rel (0) target = $region33
    $region32: #{tpu_custom_call.1} parent=1 // pred_region
      %s54 = ssub.s32 512, 512
      %55 = vsyncadd [#allocation6], %s54
      %s56 = sshll.u32 [#allocation7], 4
      %s57 = int_to_ptr.vmem [resolvable:$true] %s56
      %62 = dma.hbm_to_vmem [thread:$0]  %s7, 512, %s57, [#allocation6], 128, 128, 8
    $region33: #{tpu_custom_call.1} parent=1 // pred_fallthru
      _
    // Predicated region
    $region34: #{tpu_custom_call.1} parent=1 // pred_check
      _
    $region35: #{tpu_custom_call.1} parent=1 // pred_check_branch
      %64 = sbr.rel (0) target = $region37
    $region36: #{tpu_custom_call.1} parent=1 // pred_region
      %s66 = ssub.s32 512, 512
      %67 = vsyncadd [#allocation9], %s66
      %s68 = sshll.u32 [#allocation8], 4
      %s69 = int_to_ptr.vmem [resolvable:$true] %s68
      %74 = dma.hbm_to_vmem [thread:$0]  %s8, 512, %s69, [#allocation9], 128, 128, 8
    $region37: #{tpu_custom_call.1} parent=1 // pred_fallthru
      _
    // Predicated region
    $region38: #{tpu_custom_call.1} parent=1 // pred_check
      _
    $region39: #{tpu_custom_call.1} parent=1 // pred_check_branch
      %76 = sbr.rel (0) target = $region41
    $region40: #{tpu_custom_call.1} parent=1 // pred_region
      _
    $region41: #{tpu_custom_call.1} parent=1 // pred_fallthru
      _
    // Predicated region
    $region42: #{tpu_custom_call.1} parent=1 // pred_check
      _
    $region43: #{tpu_custom_call.1} parent=1 // pred_check_branch
      %78 = sbr.rel (0) target = $region45
    $region44: #{tpu_custom_call.1} parent=1 // pred_region
      %79 = dma.done [#allocation3], 32
    $region45: #{tpu_custom_call.1} parent=1 // pred_fallthru
      _
    // Predicated region
    $region46: #{tpu_custom_call.1} parent=1 // pred_check
      _
    $region47: #{tpu_custom_call.1} parent=1 // pred_check_branch
      %81 = sbr.rel (0) target = $region49
    $region48: #{tpu_custom_call.1} parent=1 // pred_region
      %82 = dma.done [#allocation6], 256
    $region49: #{tpu_custom_call.1} parent=1 // pred_fallthru
      _
    // Predicated region
    $region50: #{tpu_custom_call.1} parent=1 // pred_check
      _
    $region51: #{tpu_custom_call.1} parent=1 // pred_check_branch
      %84 = sbr.rel (0) target = $region53
    $region52: #{tpu_custom_call.1} parent=1 // pred_region
      %85 = dma.done [#allocation6], 512
    $region53: #{tpu_custom_call.1} parent=1 // pred_fallthru
      _
    // Predicated region
    $region54: #{tpu_custom_call.1} parent=1 // pred_check
      _
    $region55: #{tpu_custom_call.1} parent=1 // pred_check_branch
      %87 = sbr.rel (0) target = $region57
    $region56: #{tpu_custom_call.1} parent=1 // pred_region
      %88 = dma.done [#allocation9], 512
    $region57: #{tpu_custom_call.1} parent=1 // pred_fallthru
      _
    %v89 = vld [vmem:[%s9] sm:$0x1]
    %v90 = vld [vmem:[%s9 + $0x1] sm:$0x1]
    %v91 = vld [vmem:[%s9 + $0x2] sm:$0x1]
    %v92 = vld [vmem:[%s9 + $0x3] sm:$0x1]
    %v93 = vld [vmem:[%s9 + $0x4] sm:$0x1]
    %v94 = vld [vmem:[#allocation5] sm:$0xff]
    %v95 = vld [vmem:[#allocation5 + $0x8] sm:$0xff]
    %v96 = vld [vmem:[%s3] sm:$0xff]
    %v97 = vld [vmem:[%s3 + $0x8] sm:$0xff]
    %v98 = vld [vmem:[%s3 + $0x10] sm:$0xff]
    %v99 = vld [vmem:[%s3 + $0x18] sm:$0xff]
    %vm100 = vcmask 261120
    %v102 = vsel %vm100, %v94, 0
    %v105 = vsel %vm100, %v95, 0
    %107 = vmatprep.subr.mxu0 0.0
    %108 = vmatpush1.msra.mxu0 0.0
    %109 = vmatprep.subr.mxu0 0.0
    %110 = vmatpush1.msra.mxu0 0.0
    %111 = vmatprep.subr.mxu0 0.0
    %112 = vmatpush1.msra.mxu0 0.0
    %113 = vmatprep.subr.mxu0 0.0
    %114 = vmatpush1.msra.mxu0 0.0
    %115 = vmatprep.subr.mxu0 0.0
    %116 = vmatpush1.msra.mxu0 0.0
    %117 = vmatprep.subr.mxu0 0.0
    %118 = vmatpush1.msra.mxu0 0.0
    %119 = vmatprep.subr.mxu0 0.0
    %120 = vmatpush1.msra.mxu0 0.0
    %121 = vmatprep.subr.mxu0 0.0
    %122 = vmatpush1.msra.mxu0 0.0
    %123 = vmatprep.subr.mxu0 0.0
    %124 = vmatpush1.msra.mxu0 0.0
    %125 = vmatprep.subr.mxu0 0.0
    %126 = vmatpush1.msra.mxu0 0.0
    %127 = vmatprep.subr.mxu0 0.0
    %128 = vmatpush1.msra.mxu0 0.0
    %129 = vmatprep.subr.mxu0 0.0
    %130 = vmatpush1.msra.mxu0 0.0
    %131 = vmatprep.subr.mxu0 0.0
    %132 = vmatpush1.msra.mxu0 %v99
    %133 = vmatprep.subr.mxu0 0.0
    %134 = vmatpush1.msra.mxu0 %v98
    %135 = vmatprep.subr.mxu0 0.0
    %136 = vmatpush1.msra.mxu0 %v97
    %137 = vmatprep.subr.mxu0 0.0
    %138 = vmatpush1.msra.mxu0 %v96
    %139 = vmatprep.subr.mxu0 0.0
    %140 = vmatpush2.msra.mxu0 0.0
    %141 = vmatprep.subr.mxu0 0.0
    %142 = vmatpush2.msra.mxu0 0.0
    %143 = vmatprep.subr.mxu0 0.0
    %144 = vmatpush2.msra.mxu0 0.0
    %145 = vmatprep.subr.mxu0 0.0
    %146 = vmatpush2.msra.mxu0 0.0
    %147 = vmatprep.subr.mxu0 0.0
    %148 = vmatpush2.msra.mxu0 0.0
    %149 = vmatprep.subr.mxu0 0.0
    %150 = vmatpush2.msra.mxu0 0.0
    %151 = vmatprep.subr.mxu0 0.0
    %152 = vmatpush2.msra.mxu0 0.0
    %153 = vmatprep.subr.mxu0 0.0
    %154 = vmatpush2.msra.mxu0 0.0
    %155 = vmatprep.subr.mxu0 0.0
    %156 = vmatpush2.msra.mxu0 0.0
    %157 = vmatprep.subr.mxu0 0.0
    %158 = vmatpush2.msra.mxu0 0.0
    %159 = vmatprep.subr.mxu0 0.0
    %160 = vmatpush2.msra.mxu0 0.0
    %161 = vmatprep.subr.mxu0 0.0
    %162 = vmatpush2.msra.mxu0 0.0
    %163 = vmatprep.subr.mxu0 0.0
    %164 = vmatpush2.msra.mxu0 0.0
    %165 = vmatprep.subr.mxu0 0.0
    %166 = vmatpush2.msra.mxu0 0.0
    %167 = vmatprep.subr.mxu0 0.0
    %168 = vmatpush2.msra.mxu0 0.0
    %169 = vmatprep.subr.mxu0 0.0
    %170 = vmatpush2.msra.mxu0 0.0
    %171 = vmatprep.mubr.f32.mxu0 0.0
    %172 = vmatmul.mubr.f32.gmra.mxu0 %v102
    %v173 = vpop.f32.mrf.mxu0
    %v174 = vadd.f32 0.0, %v173
    %v175 = vpop.f32.mrf.mxu0
    %176 = vmatprep.mubr.f32.mxu0 0.0
    %177 = vmatmul.mubr.f32.gmra.mxu0 %v105
    %v178 = vpop.f32.mrf.mxu0
    %v179 = vadd.f32 0.0, %v178
    %v180 = vpop.f32.mrf.mxu0
    %181 = vdwg.mxu0
    %v182 = vld [vmem:[#allocation2] sm:$0x3]
    %v183 = vld [vmem:[%s4] sm:$0xff]
    %v184 = vld [vmem:[%s4 + $0x8] sm:$0xff]
    %v185 = vld [vmem:[%s4 + $0x10] sm:$0xff]
    %v186 = vld [vmem:[%s4 + $0x18] sm:$0xff]
    %v187 = vlaneseq
    %v188 = vshrl.u32 %v187, 7
    %v189 = vsub.s32 0, %v188
    %v190 = vrot.slane %v89, %v189
    %v192 = vsel %vm100, %v182, 0
    %194 = vmatprep.subr.mxu0 0.0
    %195 = vmatpush1.msra.mxu0 0.0
    %196 = vmatprep.subr.mxu0 0.0
    %197 = vmatpush1.msra.mxu0 0.0
    %198 = vmatprep.subr.mxu0 0.0
    %199 = vmatpush1.msra.mxu0 0.0
    %200 = vmatprep.subr.mxu0 0.0
    %201 = vmatpush1.msra.mxu0 0.0
    %202 = vmatprep.subr.mxu0 0.0
    %203 = vmatpush1.msra.mxu0 0.0
    %204 = vmatprep.subr.mxu0 0.0
    %205 = vmatpush1.msra.mxu0 0.0
    %206 = vmatprep.subr.mxu0 0.0
    %207 = vmatpush1.msra.mxu0 0.0
    %208 = vmatprep.subr.mxu0 0.0
    %209 = vmatpush1.msra.mxu0 0.0
    %210 = vmatprep.subr.mxu0 0.0
    %211 = vmatpush1.msra.mxu0 0.0
    %212 = vmatprep.subr.mxu0 0.0
    %213 = vmatpush1.msra.mxu0 0.0
    %214 = vmatprep.subr.mxu0 0.0
    %215 = vmatpush1.msra.mxu0 0.0
    %216 = vmatprep.subr.mxu0 0.0
    %217 = vmatpush1.msra.mxu0 0.0
    %218 = vmatprep.subr.mxu0 0.0
    %219 = vmatpush1.msra.mxu0 %v186
    %220 = vmatprep.subr.mxu0 0.0
    %221 = vmatpush1.msra.mxu0 %v185
    %222 = vmatprep.subr.mxu0 0.0
    %223 = vmatpush1.msra.mxu0 %v184
    %224 = vmatprep.subr.mxu0 0.0
    %225 = vmatpush1.msra.mxu0 %v183
    %226 = vmatprep.subr.mxu0 0.0
    %227 = vmatpush2.msra.mxu0 0.0
    %228 = vmatprep.subr.mxu0 0.0
    %229 = vmatpush2.msra.mxu0 0.0
    %230 = vmatprep.subr.mxu0 0.0
    %231 = vmatpush2.msra.mxu0 0.0
    %232 = vmatprep.subr.mxu0 0.0
    %233 = vmatpush2.msra.mxu0 0.0
    %234 = vmatprep.subr.mxu0 0.0
    %235 = vmatpush2.msra.mxu0 0.0
    %236 = vmatprep.subr.mxu0 0.0
    %237 = vmatpush2.msra.mxu0 0.0
    %238 = vmatprep.subr.mxu0 0.0
    %239 = vmatpush2.msra.mxu0 0.0
    %240 = vmatprep.subr.mxu0 0.0
    %241 = vmatpush2.msra.mxu0 0.0
    %242 = vmatprep.subr.mxu0 0.0
    %243 = vmatpush2.msra.mxu0 0.0
    %244 = vmatprep.subr.mxu0 0.0
    %245 = vmatpush2.msra.mxu0 0.0
    %246 = vmatprep.subr.mxu0 0.0
    %247 = vmatpush2.msra.mxu0 0.0
    %248 = vmatprep.subr.mxu0 0.0
    %249 = vmatpush2.msra.mxu0 0.0
    %250 = vmatprep.subr.mxu0 0.0
    %251 = vmatpush2.msra.mxu0 0.0
    %252 = vmatprep.subr.mxu0 0.0
    %253 = vmatpush2.msra.mxu0 0.0
    %254 = vmatprep.subr.mxu0 0.0
    %255 = vmatpush2.msra.mxu0 0.0
    %256 = vmatprep.subr.mxu0 0.0
    %257 = vmatpush2.msra.mxu0 0.0
    %258 = vmatprep.mubr.f32.mxu0 0.0
    %259 = vmatmul.mubr.f32.gmra.mxu0 %v192
    %v260 = vpop.f32.mrf.mxu0
    %v261 = vadd.f32 %v190, %v260
    %v262 = vpop.f32.mrf.mxu0
    %263 = vdwg.mxu0
    %v266 = vunpack.c.l.s4 1966171168
    %v267 = vunpack.c.0.s8 %v266
    %v268 = vlaneseq
    %v269 = vshrl.u32 %v268, 7
    %v270 = vsub.s32 %v267, %v269
    %v271 = vrot.slane %v261, %v270
    %v272 = vcombine.high %v271, %v271
    %v274 = vunpack.c.l.s4 1966171168
    %v275 = vunpack.c.0.s8 %v274
    %v276 = vlaneseq
    %v277 = vshrl.u32 %v276, 7
    %v278 = vsub.s32 %v275, %v277
    %v279 = vrot.slane %v271, %v278
    %v281 = vunpack.c.l.s4 1966171168
    %v282 = vunpack.c.0.s8 %v281
    %v283 = vlaneseq
    %v284 = vshrl.u32 %v283, 7
    %v285 = vsub.s32 %v282, %v284
    %v286 = vrot.slane %v272, %v285
    %v287 = vlaneseq
    %v288 = vshrl.u32 %v287, 7
    %v289 = vsub.s32 0, %v288
    %v290 = vrot.slane %v279, %v289
    %v291 = vlaneseq
    %v292 = vshrl.u32 %v291, 7
    %v293 = vsub.s32 0, %v292
    %v294 = vrot.slane %v286, %v293
    %v297 = vadd.f32 %v174, %v290
    %v298 = vadd.f32 %v179, %v294
    %v299 = vtanh.pop %v297
    %v300 = vtanh.pop %v298
    %v301 = vlaneseq
    %v302 = vshrl.u32 %v301, 7
    %v303 = vsub.s32 0, %v302
    %v304 = vrot.slane %v90, %v303
    %v305 = vmul.f32 %v299, %v304
    %v306 = vmul.f32 %v300, %v304
    %v307 = vsel %vm100, %v305, 0.0
    %308 = vadd.xlane.f32.xlu0 %v307
    %v309 = vpop.xlane.xlu0 %308
    %v310 = vsel %vm100, %v306, 0.0
    %311 = vadd.xlane.f32.xlu0 %v310
    %v312 = vpop.xlane.xlu0 %311
    %v315 = vlaneseq
    %v316 = vand.u32 %v315, 127
    %v317 = vlaneseq
    %v318 = vshrl.u32 %v317, 7
    %v319 = vsub.s32 %v316, %v318
    %v320 = vrot.slane %v309, %v319
    %v321 = vlaneseq
    %v322 = vshrl.u32 %v321, 7
    %v323 = vsub.s32 %v316, %v322
    %v324 = vrot.slane %v312, %v323
    %vm325 = vcmask 1041409
    %v326 = vsel %vm325, %v324, %v320
    %vm328 = vcmask 58368
    %v329 = vsel %vm328, %v326, -inf
    %330 = vmax.xlane.f32.xlu0 %v329
    %v331 = vpop.xlane.xlu0 %330
    %v333 = vlaneseq
    %v334 = vshrl.u32 %v333, 7
    %v335 = vsub.s32 0, %v334
    %v336 = vrot.slane %v331, %v335
    %v337 = vlaneseq
    %v338 = vshrl.u32 %v337, 7
    %v339 = vsub.s32 1, %v338
    %v340 = vrot.slane %v331, %v339
    %v343 = vsub.f32 %v309, %v336
    %v344 = vsub.f32 %v312, %v340
    %v345 = vmul.f32 %v343, 1.442695
    %v346 = vpow.pop %v345
    %v347 = vmul.f32 %v344, 1.442695
    %v348 = vpow.pop %v347
    %351 = vset.pattern.permute.xlu0 0
    %352 = vperm.xlu0 %351, %v346
    %v353 = vpop.permute.xlu0 %352
    %354 = vset.pattern.permute.xlu0 0
    %355 = vperm.xlu0 %354, %v348
    %v356 = vpop.permute.xlu0 %355
    %v357 = vlaneseq
    %v358 = vshrl.u32 %v357, 7
    %v359 = vsub.s32 %v316, %v358
    %v360 = vrot.slane %v353, %v359
    %v361 = vlaneseq
    %v362 = vshrl.u32 %v361, 7
    %v363 = vsub.s32 %v316, %v362
    %v364 = vrot.slane %v356, %v363
    %v365 = vsel %vm325, %v364, %v360
    %v367 = vsel %vm328, %v365, 0.0
    %368 = vadd.xlane.f32.xlu0 %v367
    %v369 = vpop.xlane.xlu0 %368
    %v370 = vrcp.pop %v369
    %v372 = vlaneseq
    %v373 = vshrl.u32 %v372, 7
    %v374 = vsub.s32 0, %v373
    %v375 = vrot.slane %v370, %v374
    %v376 = vlaneseq
    %v377 = vshrl.u32 %v376, 7
    %v378 = vsub.s32 1, %v377
    %v379 = vrot.slane %v370, %v378
    %v382 = vmul.f32 %v346, %v375
    %v383 = vmul.f32 %v348, %v379
    %385 = vset.pattern.permute.xlu0 0
    %386 = vperm.xlu0 %385, %v382
    %v387 = vpop.permute.xlu0 %386
    %390 = vset.pattern.permute.xlu0 0
    %391 = vperm.xlu0 %390, %v383
    %v392 = vpop.permute.xlu0 %391
    %v394 = vmul.f32 %v387, %v94
    %v395 = vmul.f32 %v392, %v95
    %v396 = vsel %vm100, %v394, 0.0
    %v397 = vrot.slane %v396, 4
    %v398 = vadd.f32 %v396, %v397
    %v399 = vrot.slane %v398, 2
    %v400 = vadd.f32 %v398, %v399
    %v401 = vrot.slane %v400, 1
    %v402 = vadd.f32 %v400, %v401
    %v403 = vsel %vm100, %v395, 0.0
    %v404 = vrot.slane %v403, 4
    %v405 = vadd.f32 %v403, %v404
    %v406 = vrot.slane %v405, 2
    %v407 = vadd.f32 %v405, %v406
    %v408 = vrot.slane %v407, 1
    %v409 = vadd.f32 %v407, %v408
    %v410 = vld [vmem:[%s0] sm:$0x3]
    %411 = vset.pattern.permute.xlu0 0
    %412 = vperm.xlu0 %411, %v410
    %v413 = vpop.permute.xlu0 %412
    %vm414 = vcmp.eq.s32.totalorder %v316, %v413
    %v415 = vsel %vm414, 1, 0
    %v416 = vcvt.s32.f32 %v415
    %v417 = vld [vmem:[%s5] sm:$0xff]
    %v418 = vld [vmem:[%s5 + $0x8] sm:$0xff]
    %v419 = vld [vmem:[%s5 + $0x10] sm:$0xff]
    %v420 = vld [vmem:[%s5 + $0x18] sm:$0xff]
    %v421 = vld [vmem:[%s5 + $0x20] sm:$0xff]
    %v422 = vld [vmem:[%s5 + $0x28] sm:$0xff]
    %v423 = vld [vmem:[%s5 + $0x30] sm:$0xff]
    %v424 = vld [vmem:[%s5 + $0x38] sm:$0xff]
    %vm425 = vcmask 523264
    %v427 = vsel %vm425, %v416, 0
    %429 = vmatprep.subr.mxu0 0.0
    %430 = vmatpush1.msra.mxu0 0.0
    %431 = vmatprep.subr.mxu0 0.0
    %432 = vmatpush1.msra.mxu0 0.0
    %433 = vmatprep.subr.mxu0 0.0
    %434 = vmatpush1.msra.mxu0 0.0
    %435 = vmatprep.subr.mxu0 0.0
    %436 = vmatpush1.msra.mxu0 0.0
    %437 = vmatprep.subr.mxu0 0.0
    %438 = vmatpush1.msra.mxu0 0.0
    %439 = vmatprep.subr.mxu0 0.0
    %440 = vmatpush1.msra.mxu0 0.0
    %441 = vmatprep.subr.mxu0 0.0
    %442 = vmatpush1.msra.mxu0 0.0
    %443 = vmatprep.subr.mxu0 0.0
    %444 = vmatpush1.msra.mxu0 0.0
    %445 = vmatprep.subr.mxu0 0.0
    %446 = vmatpush1.msra.mxu0 %v424
    %447 = vmatprep.subr.mxu0 0.0
    %448 = vmatpush1.msra.mxu0 %v423
    %449 = vmatprep.subr.mxu0 0.0
    %450 = vmatpush1.msra.mxu0 %v422
    %451 = vmatprep.subr.mxu0 0.0
    %452 = vmatpush1.msra.mxu0 %v421
    %453 = vmatprep.subr.mxu0 0.0
    %454 = vmatpush1.msra.mxu0 %v420
    %455 = vmatprep.subr.mxu0 0.0
    %456 = vmatpush1.msra.mxu0 %v419
    %457 = vmatprep.subr.mxu0 0.0
    %458 = vmatpush1.msra.mxu0 %v418
    %459 = vmatprep.subr.mxu0 0.0
    %460 = vmatpush1.msra.mxu0 %v417
    %461 = vmatprep.subr.mxu0 0.0
    %462 = vmatpush2.msra.mxu0 0.0
    %463 = vmatprep.subr.mxu0 0.0
    %464 = vmatpush2.msra.mxu0 0.0
    %465 = vmatprep.subr.mxu0 0.0
    %466 = vmatpush2.msra.mxu0 0.0
    %467 = vmatprep.subr.mxu0 0.0
    %468 = vmatpush2.msra.mxu0 0.0
    %469 = vmatprep.subr.mxu0 0.0
    %470 = vmatpush2.msra.mxu0 0.0
    %471 = vmatprep.subr.mxu0 0.0
    %472 = vmatpush2.msra.mxu0 0.0
    %473 = vmatprep.subr.mxu0 0.0
    %474 = vmatpush2.msra.mxu0 0.0
    %475 = vmatprep.subr.mxu0 0.0
    %476 = vmatpush2.msra.mxu0 0.0
    %477 = vmatprep.subr.mxu0 0.0
    %478 = vmatpush2.msra.mxu0 0.0
    %479 = vmatprep.subr.mxu0 0.0
    %480 = vmatpush2.msra.mxu0 0.0
    %481 = vmatprep.subr.mxu0 0.0
    %482 = vmatpush2.msra.mxu0 0.0
    %483 = vmatprep.subr.mxu0 0.0
    %484 = vmatpush2.msra.mxu0 0.0
    %485 = vmatprep.subr.mxu0 0.0
    %486 = vmatpush2.msra.mxu0 0.0
    %487 = vmatprep.subr.mxu0 0.0
    %488 = vmatpush2.msra.mxu0 0.0
    %489 = vmatprep.subr.mxu0 0.0
    %490 = vmatpush2.msra.mxu0 0.0
    %491 = vmatprep.subr.mxu0 0.0
    %492 = vmatpush2.msra.mxu0 0.0
    %493 = vmatprep.mubr.f32.mxu0 0.0
    %494 = vmatmul.mubr.f32.gmra.mxu0 %v427
    %v495 = vpop.f32.mrf.mxu0
    %v496 = vadd.f32 0.0, %v495
    %v497 = vpop.f32.mrf.mxu0
    %498 = vdwg.mxu0
    %v499 = vld [vmem:[%s6] sm:$0xff]
    %v500 = vld [vmem:[%s6 + $0x8] sm:$0xff]
    %v501 = vld [vmem:[%s6 + $0x10] sm:$0xff]
    %v502 = vld [vmem:[%s6 + $0x18] sm:$0xff]
    %v503 = vld [vmem:[#allocation7] sm:$0xff]
    %v504 = vld [vmem:[#allocation7 + $0x8] sm:$0xff]
    %v505 = vld [vmem:[#allocation7 + $0x10] sm:$0xff]
    %v506 = vld [vmem:[#allocation7 + $0x18] sm:$0xff]
    %v508 = vsel %vm100, %v496, 0
    %510 = vmatprep.subr.mxu0 0.0
    %511 = vmatpush1.msra.mxu0 0.0
    %512 = vmatprep.subr.mxu0 0.0
    %513 = vmatpush1.msra.mxu0 0.0
    %514 = vmatprep.subr.mxu0 0.0
    %515 = vmatpush1.msra.mxu0 0.0
    %516 = vmatprep.subr.mxu0 0.0
    %517 = vmatpush1.msra.mxu0 0.0
    %518 = vmatprep.subr.mxu0 0.0
    %519 = vmatpush1.msra.mxu0 0.0
    %520 = vmatprep.subr.mxu0 0.0
    %521 = vmatpush1.msra.mxu0 0.0
    %522 = vmatprep.subr.mxu0 0.0
    %523 = vmatpush1.msra.mxu0 0.0
    %524 = vmatprep.subr.mxu0 0.0
    %525 = vmatpush1.msra.mxu0 0.0
    %526 = vmatprep.subr.mxu0 0.0
    %527 = vmatpush1.msra.mxu0 0.0
    %528 = vmatprep.subr.mxu0 0.0
    %529 = vmatpush1.msra.mxu0 0.0
    %530 = vmatprep.subr.mxu0 0.0
    %531 = vmatpush1.msra.mxu0 0.0
    %532 = vmatprep.subr.mxu0 0.0
    %533 = vmatpush1.msra.mxu0 0.0
    %534 = vmatprep.subr.mxu0 0.0
    %535 = vmatpush1.msra.mxu0 %v506
    %536 = vmatprep.subr.mxu0 0.0
    %537 = vmatpush1.msra.mxu0 %v505
    %538 = vmatprep.subr.mxu0 0.0
    %539 = vmatpush1.msra.mxu0 %v504
    %540 = vmatprep.subr.mxu0 0.0
    %541 = vmatpush1.msra.mxu0 %v503
    %542 = vmatprep.subr.mxu0 0.0
    %543 = vmatpush2.msra.mxu0 0.0
    %544 = vmatprep.subr.mxu0 0.0
    %545 = vmatpush2.msra.mxu0 0.0
    %546 = vmatprep.subr.mxu0 0.0
    %547 = vmatpush2.msra.mxu0 0.0
    %548 = vmatprep.subr.mxu0 0.0
    %549 = vmatpush2.msra.mxu0 0.0
    %550 = vmatprep.subr.mxu0 0.0
    %551 = vmatpush2.msra.mxu0 0.0
    %552 = vmatprep.subr.mxu0 0.0
    %553 = vmatpush2.msra.mxu0 0.0
    %554 = vmatprep.subr.mxu0 0.0
    %555 = vmatpush2.msra.mxu0 0.0
    %556 = vmatprep.subr.mxu0 0.0
    %557 = vmatpush2.msra.mxu0 0.0
    %558 = vmatprep.subr.mxu0 0.0
    %559 = vmatpush2.msra.mxu0 0.0
    %560 = vmatprep.subr.mxu0 0.0
    %561 = vmatpush2.msra.mxu0 0.0
    %562 = vmatprep.subr.mxu0 0.0
    %563 = vmatpush2.msra.mxu0 0.0
    %564 = vmatprep.subr.mxu0 0.0
    %565 = vmatpush2.msra.mxu0 0.0
    %566 = vmatprep.subr.mxu0 0.0
    %567 = vmatpush2.msra.mxu0 0.0
    %568 = vmatprep.subr.mxu0 0.0
    %569 = vmatpush2.msra.mxu0 0.0
    %570 = vmatprep.subr.mxu0 0.0
    %571 = vmatpush2.msra.mxu0 0.0
    %572 = vmatprep.subr.mxu0 0.0
    %573 = vmatpush2.msra.mxu0 0.0
    %574 = vmatprep.mubr.f32.mxu0 0.0
    %575 = vmatmul.mubr.f32.gmra.mxu0 %v508
    %v576 = vpop.f32.mrf.mxu0
    %v577 = vadd.f32 0.0, %v576
    %v578 = vpop.f32.mrf.mxu0
    %579 = vdwg.mxu0
    %v582 = vsel %vm325, %v409, %v402
    %v583 = vsel %vm100, %v582, 0
    %585 = vmatprep.subr.mxu0 0.0
    %586 = vmatpush1.msra.mxu0 0.0
    %587 = vmatprep.subr.mxu0 0.0
    %588 = vmatpush1.msra.mxu0 0.0
    %589 = vmatprep.subr.mxu0 0.0
    %590 = vmatpush1.msra.mxu0 0.0
    %591 = vmatprep.subr.mxu0 0.0
    %592 = vmatpush1.msra.mxu0 0.0
    %593 = vmatprep.subr.mxu0 0.0
    %594 = vmatpush1.msra.mxu0 0.0
    %595 = vmatprep.subr.mxu0 0.0
    %596 = vmatpush1.msra.mxu0 0.0
    %597 = vmatprep.subr.mxu0 0.0
    %598 = vmatpush1.msra.mxu0 0.0
    %599 = vmatprep.subr.mxu0 0.0
    %600 = vmatpush1.msra.mxu0 0.0
    %601 = vmatprep.subr.mxu0 0.0
    %602 = vmatpush1.msra.mxu0 0.0
    %603 = vmatprep.subr.mxu0 0.0
    %604 = vmatpush1.msra.mxu0 0.0
    %605 = vmatprep.subr.mxu0 0.0
    %606 = vmatpush1.msra.mxu0 0.0
    %607 = vmatprep.subr.mxu0 0.0
    %608 = vmatpush1.msra.mxu0 0.0
    %609 = vmatprep.subr.mxu0 0.0
    %610 = vmatpush1.msra.mxu0 %v502
    %611 = vmatprep.subr.mxu0 0.0
    %612 = vmatpush1.msra.mxu0 %v501
    %613 = vmatprep.subr.mxu0 0.0
    %614 = vmatpush1.msra.mxu0 %v500
    %615 = vmatprep.subr.mxu0 0.0
    %616 = vmatpush1.msra.mxu0 %v499
    %617 = vmatprep.subr.mxu0 0.0
    %618 = vmatpush2.msra.mxu0 0.0
    %619 = vmatprep.subr.mxu0 0.0
    %620 = vmatpush2.msra.mxu0 0.0
    %621 = vmatprep.subr.mxu0 0.0
    %622 = vmatpush2.msra.mxu0 0.0
    %623 = vmatprep.subr.mxu0 0.0
    %624 = vmatpush2.msra.mxu0 0.0
    %625 = vmatprep.subr.mxu0 0.0
    %626 = vmatpush2.msra.mxu0 0.0
    %627 = vmatprep.subr.mxu0 0.0
    %628 = vmatpush2.msra.mxu0 0.0
    %629 = vmatprep.subr.mxu0 0.0
    %630 = vmatpush2.msra.mxu0 0.0
    %631 = vmatprep.subr.mxu0 0.0
    %632 = vmatpush2.msra.mxu0 0.0
    %633 = vmatprep.subr.mxu0 0.0
    %634 = vmatpush2.msra.mxu0 0.0
    %635 = vmatprep.subr.mxu0 0.0
    %636 = vmatpush2.msra.mxu0 0.0
    %637 = vmatprep.subr.mxu0 0.0
    %638 = vmatpush2.msra.mxu0 0.0
    %639 = vmatprep.subr.mxu0 0.0
    %640 = vmatpush2.msra.mxu0 0.0
    %641 = vmatprep.subr.mxu0 0.0
    %642 = vmatpush2.msra.mxu0 0.0
    %643 = vmatprep.subr.mxu0 0.0
    %644 = vmatpush2.msra.mxu0 0.0
    %645 = vmatprep.subr.mxu0 0.0
    %646 = vmatpush2.msra.mxu0 0.0
    %647 = vmatprep.subr.mxu0 0.0
    %648 = vmatpush2.msra.mxu0 0.0
    %649 = vmatprep.mubr.f32.mxu0 0.0
    %650 = vmatmul.mubr.f32.gmra.mxu0 %v583
    %v651 = vpop.f32.mrf.mxu0
    %v652 = vadd.f32 %v577, %v651
    %v653 = vpop.f32.mrf.mxu0
    %654 = vdwg.mxu0
    %v655 = vlaneseq
    %v656 = vshrl.u32 %v655, 7
    %v657 = vsub.s32 0, %v656
    %v658 = vrot.slane %v91, %v657
    %v659 = vadd.f32 %v652, %v658
    %v660 = vxor.u32 %v659, 2147483648
    %v661 = vmul.f32 %v660, 1.442695
    %v662 = vpow.pop %v661
    %v663 = vadd.f32 %v662, 1.0
    %v664 = vrcp.pop %v663
    %v665 = vmul.f32 1.0, %v664
    %v666 = vlaneseq
    %v667 = vshrl.u32 %v666, 7
    %v668 = vsub.s32 0, %v667
    %v669 = vrot.slane %v92, %v668
    %v670 = vmul.f32 %v665, %v669
    %672 = vrot.lane.b32.xlu0 %v670, 64
    %v673 = vpop.permute.xlu0 %672
    %v675 = vadd.f32 %v659, %v673
    %v676 = vtanh.pop %v675
    %v677 = vsub.f32 1.0, %v665
    %679 = vrot.lane.b32.xlu0 %v676, 96
    %v680 = vpop.permute.xlu0 %679
    %v682 = vmul.f32 %v677, %v680
    %v683 = vld [vmem:[#allocation8] sm:$0xff]
    %v684 = vld [vmem:[#allocation8 + $0x8] sm:$0xff]
    %v685 = vld [vmem:[#allocation8 + $0x10] sm:$0xff]
    %v686 = vld [vmem:[#allocation8 + $0x18] sm:$0xff]
    %v687 = vlaneseq
    %v688 = vshrl.u32 %v687, 7
    %v689 = vsub.s32 0, %v688
    %v690 = vrot.slane %v93, %v689
    %692 = vrot.lane.b32.xlu0 %v682, 96
    %v693 = vpop.permute.xlu0 %692
    %v694 = vsel %vm100, %v693, 0
    %696 = vmatprep.subr.mxu0 0.0
    %697 = vmatpush1.msra.mxu0 0.0
    %698 = vmatprep.subr.mxu0 0.0
    %699 = vmatpush1.msra.mxu0 0.0
    %700 = vmatprep.subr.mxu0 0.0
    %701 = vmatpush1.msra.mxu0 0.0
    %702 = vmatprep.subr.mxu0 0.0
    %703 = vmatpush1.msra.mxu0 0.0
    %704 = vmatprep.subr.mxu0 0.0
    %705 = vmatpush1.msra.mxu0 0.0
    %706 = vmatprep.subr.mxu0 0.0
    %707 = vmatpush1.msra.mxu0 0.0
    %708 = vmatprep.subr.mxu0 0.0
    %709 = vmatpush1.msra.mxu0 0.0
    %710 = vmatprep.subr.mxu0 0.0
    %711 = vmatpush1.msra.mxu0 0.0
    %712 = vmatprep.subr.mxu0 0.0
    %713 = vmatpush1.msra.mxu0 0.0
    %714 = vmatprep.subr.mxu0 0.0
    %715 = vmatpush1.msra.mxu0 0.0
    %716 = vmatprep.subr.mxu0 0.0
    %717 = vmatpush1.msra.mxu0 0.0
    %718 = vmatprep.subr.mxu0 0.0
    %719 = vmatpush1.msra.mxu0 0.0
    %720 = vmatprep.subr.mxu0 0.0
    %721 = vmatpush1.msra.mxu0 %v686
    %722 = vmatprep.subr.mxu0 0.0
    %723 = vmatpush1.msra.mxu0 %v685
    %724 = vmatprep.subr.mxu0 0.0
    %725 = vmatpush1.msra.mxu0 %v684
    %726 = vmatprep.subr.mxu0 0.0
    %727 = vmatpush1.msra.mxu0 %v683
    %728 = vmatprep.subr.mxu0 0.0
    %729 = vmatpush2.msra.mxu0 0.0
    %730 = vmatprep.subr.mxu0 0.0
    %731 = vmatpush2.msra.mxu0 0.0
    %732 = vmatprep.subr.mxu0 0.0
    %733 = vmatpush2.msra.mxu0 0.0
    %734 = vmatprep.subr.mxu0 0.0
    %735 = vmatpush2.msra.mxu0 0.0
    %736 = vmatprep.subr.mxu0 0.0
    %737 = vmatpush2.msra.mxu0 0.0
    %738 = vmatprep.subr.mxu0 0.0
    %739 = vmatpush2.msra.mxu0 0.0
    %740 = vmatprep.subr.mxu0 0.0
    %741 = vmatpush2.msra.mxu0 0.0
    %742 = vmatprep.subr.mxu0 0.0
    %743 = vmatpush2.msra.mxu0 0.0
    %744 = vmatprep.subr.mxu0 0.0
    %745 = vmatpush2.msra.mxu0 0.0
    %746 = vmatprep.subr.mxu0 0.0
    %747 = vmatpush2.msra.mxu0 0.0
    %748 = vmatprep.subr.mxu0 0.0
    %749 = vmatpush2.msra.mxu0 0.0
    %750 = vmatprep.subr.mxu0 0.0
    %751 = vmatpush2.msra.mxu0 0.0
    %752 = vmatprep.subr.mxu0 0.0
    %753 = vmatpush2.msra.mxu0 0.0
    %754 = vmatprep.subr.mxu0 0.0
    %755 = vmatpush2.msra.mxu0 0.0
    %756 = vmatprep.subr.mxu0 0.0
    %757 = vmatpush2.msra.mxu0 0.0
    %758 = vmatprep.subr.mxu0 0.0
    %759 = vmatpush2.msra.mxu0 0.0
    %760 = vmatprep.mubr.f32.mxu0 0.0
    %761 = vmatmul.mubr.f32.gmra.mxu0 %v694
    %v762 = vpop.f32.mrf.mxu0
    %v763 = vadd.f32 %v690, %v762
    %v764 = vpop.f32.mrf.mxu0
    %765 = vdwg.mxu0
    %766 = vrot.lane.b32.xlu0 %v682, 32
    %v767 = vpop.permute.xlu0 %766
    %v769 = vadd.s32 %v316, 4294967200
    %v770 = vlaneseq
    %v771 = vshrl.u32 %v770, 7
    %v772 = vsub.s32 %v769, %v771
    %v773 = vrot.slane %v387, %v772
    %v774 = vlaneseq
    %v775 = vshrl.u32 %v774, 7
    %v776 = vsub.s32 %v769, %v775
    %v777 = vrot.slane %v392, %v776
    %v778 = vsel %vm325, %v777, %v773
    %v780 = vsel %vm425, %v763, %v767
    %vm781 = vcmask 785408
    %v782 = vsel %vm781, %v780, %v778
    %vm783 = vcmask 850944
    %v784 = vsel %vm783, %v782, 0.0
    %785 = vst [vmem:[#allocation10] sm:$0x3] %v784
    // Predicated region
    $region58: #{tpu_custom_call.1} parent=1 // pred_check
      _
    $region59: #{tpu_custom_call.1} parent=1 // pred_check_branch
      %787 = sbr.rel (0) target = $region61
    $region60: #{tpu_custom_call.1} parent=1 // pred_region
      %s789 = ssub.s32 32, 32
      %790 = vsyncadd [#allocation4], %s789
      %s792 = sshll.u32 [#allocation10], 4
      %s793 = int_to_ptr.vmem [resolvable:$true] %s792
      %795 = dma.vmem_to_hbm [thread:$0]  %s793, 32, %s10, [#allocation4]
    $region61: #{tpu_custom_call.1} parent=1 // pred_fallthru
      _
    // Predicated region
    $region62: #{tpu_custom_call.1} parent=1 // pred_check
      _
    $region63: #{tpu_custom_call.1} parent=1 // pred_check_branch
      %797 = sbr.rel (0) target = $region65
    $region64: #{tpu_custom_call.1} parent=1 // pred_region
      %798 = dma.done [#allocation4], 32
    $region65: #{tpu_custom_call.1} parent=1 // pred_fallthru
      _
    %799 = vsyncpa [#allocation3], 1
    %800 = vsyncpa [#allocation6], 1
    %801 = vsyncpa [#allocation9], 1
    %802 = vsyncpa [#allocation4], 1

</llo_original>
